<compile_context>
chip_gen: v7x
topology: tpu7x:2x2x1
jax: 0.10.0
libtpu: 0.0.40
codegen_flags: <defaults>
</compile_context>

<pallas_src>
import jax
import jax.numpy as jnp
import numpy as np
from jax import lax
from jax.experimental import pallas as pl
from jax.experimental.pallas import tpu as pltpu

# ---- static config (mirrors net_params / NODEParams of the PyTorch module) ----
N_BLOCKS = 2          # node_params.n_blocks
KS = 3                # node_params.ks  (3x3 conv, padding=1)
H_STEP = 0.1          # node_params.h
NEG_SLOPE = 0.01      # nn.LeakyReLU default  (node_params.act == 'ReLU' branch)
KS_POOL = 2           # net_params.ks_pool   (pooling == 'Avg')
STRD_POOL = 2         # net_params.strd_pool
BOTH_BORDER_PAD = True
N_F_IN = 4
N_F_OUT = 8
IMG = 16
BATCH = 2
OUT_LANES = 128       # lane-dense output width for the fused pool matmul

# tap offsets (dy, dx) in the same order the weights are packed: t = ky*KS + kx
TAPS = [(ky - 1, kx - 1) for ky in range(KS) for kx in range(KS)]


def _make_unit_kernel(H, W, NC):
    HW = H * W
    TAP_ROWS = KS * KS * NC        # 72 im2col rows (9 taps x NC)
    PAD_ROWS = 8                   # 1 ones row (bias) + 7 zero rows -> 8-aligned
    STACK = TAP_ROWS + PAD_ROWS    # 80

    def unit_kernel(w_ref, m_ref, x_ref, p_ref, s_ref, o_ref, xs_ref):
        # w_ref : VMEM f32[N_BLOCKS, NC, STACK]   fused tap+bias weights (H_STEP folded)
        # m_ref : VMEM f32[KS*KS, NC, HW]         pre-broadcast border masks
        # x_ref : VMEM f32[NC, HW]                lane-dense input (NC = N*C)
        # p_ref : VMEM f32[HW, OUT_LANES]         flattened avg-pool matrix (zero-padded)
        # s_ref : VMEM f32[NPAD, NC]              channel zero-pad scatter matrix
        # o_ref : VMEM f32[NPAD, OUT_LANES]
        # xs_ref: VMEM f32[STACK, HW]             im2col scratch
        # Constant tail of the stack: row TAP_ROWS = 1.0 (bias), remaining rows 0.
        rid = lax.broadcasted_iota(jnp.int32, (PAD_ROWS, HW), 0)
        xs_ref[pl.ds(TAP_ROWS, PAD_ROWS), :] = jnp.where(
            rid == 0, jnp.float32(1.0), jnp.float32(0.0))

        y = x_ref[...]                                   # (NC, HW)

        # ---- NODE iterations: Y = Y + LeakyReLU(h*conv3x3(Y) + h*bias) ----
        for j in range(N_BLOCKS):
            for t, (dy, dx) in enumerate(TAPS):
                if dy == 0 and dx == 0:
                    xs_ref[pl.ds(t * NC, NC), :] = y     # center tap: no shift/mask
                else:
                    off = dy * W + dx
                    # shifted[f] = y[f + off] for in-bounds taps, 0 outside.
                    xs_ref[pl.ds(t * NC, NC), :] = (
                        pltpu.roll(y, shift=(-off) % HW, axis=1) * m_ref[t])
            z = jnp.dot(w_ref[j], xs_ref[...],
                        preferred_element_type=jnp.float32)   # one ~80-deep matmul
            y = y + jnp.maximum(z, NEG_SLOPE * z)             # LeakyReLU (h folded)

        # ---- fused AvgPool2d(2,2) + channel zero-pad: two lane-dense matmuls ----
        pooled = jnp.dot(y, p_ref[...], preferred_element_type=jnp.float32)   # (NC,128)
        o_ref[...] = jnp.dot(s_ref[...], pooled,
                             preferred_element_type=jnp.float32)              # (NPAD,128)

    return unit_kernel


@jax.jit
def unit_forward(x, weights, biases):
    """x: (N, C, H, W) f32; weights: (N_BLOCKS, C, C, KS, KS); biases: (N_BLOCKS, C)."""
    N, C, H, W = x.shape
    H2, W2 = H // STRD_POOL, W // STRD_POOL
    NC, HW, HW2 = N * C, H * W, (H // STRD_POOL) * (W // STRD_POOL)
    NPAD = N * N_F_OUT
    TAP_ROWS = KS * KS * NC
    PAD_ROWS = 8
    STACK = TAP_ROWS + PAD_ROWS

    x_flat = x.reshape(NC, HW).astype(jnp.float32)

    # Fused per-block weight stack: 9 block-diag(batch) tap matrices laid out as
    # columns, a bias column, zero-padding to STACK columns; H_STEP folded in
    # (exact because LeakyReLU is positively homogeneous and h > 0).
    w_taps = jnp.transpose(weights.astype(jnp.float32), (0, 3, 4, 1, 2)) \
                .reshape(N_BLOCKS, KS * KS, C, C)                   # [j, t, o, c]
    eye_n = jnp.eye(N, dtype=jnp.float32)
    w_bd = jnp.einsum('nm,jtoc->jtnomc', eye_n, w_taps) \
              .reshape(N_BLOCKS, KS * KS, NC, NC)                    # block-diag over batch
    w_cols = jnp.transpose(w_bd, (0, 2, 1, 3)).reshape(N_BLOCKS, NC, TAP_ROWS)
    b_col = jnp.tile(biases.astype(jnp.float32), (1, N)).reshape(N_BLOCKS, NC, 1)
    w_stack = H_STEP * jnp.concatenate(
        [w_cols, b_col,
         jnp.zeros((N_BLOCKS, NC, STACK - TAP_ROWS - 1), jnp.float32)], axis=-1)

    # Border masks per tap, pre-broadcast over sublanes (constants, numpy).
    ii = np.arange(HW) // W
    jj = np.arange(HW) % W
    masks = np.stack(
        [((ii + dy >= 0) & (ii + dy < H) & (jj + dx >= 0) & (jj + dx < W))
         .astype(np.float32) for dy, dx in TAPS])                    # (9, HW)
    m = jnp.asarray(np.broadcast_to(masks[:, None, :], (KS * KS, NC, HW)).copy())

    # Flattened 2x2 average-pool matrix (HW, 128); extra columns are zero.
    P = np.zeros((HW, OUT_LANES), np.float32)
    for p_idx in range(HW2):
        i2, j2 = divmod(p_idx, W2)
        for di in range(KS_POOL):
            for dj in range(KS_POOL):
                src = (STRD_POOL * i2 + di) * W + (STRD_POOL * j2 + dj)
                P[src, p_idx] = 1.0 / (KS_POOL * KS_POOL)
    P = jnp.asarray(P)

    # Channel zero-pad scatter matrix: row n*N_F_OUT + pad + c <- y row n*C + c.
    pad = (N_F_OUT - N_F_IN) // 2 if BOTH_BORDER_PAD else 0
    S = np.zeros((NPAD, NC), np.float32)
    for n in range(N):
        for c in range(C):
            S[n * N_F_OUT + pad + c, n * C + c] = 1.0
    S = jnp.asarray(S)

    out = pl.pallas_call(
        _make_unit_kernel(H, W, NC),
        out_shape=jax.ShapeDtypeStruct((NPAD, OUT_LANES), jnp.float32),
        in_specs=[pl.BlockSpec(memory_space=pltpu.MemorySpace.VMEM)] * 5,
        out_specs=pl.BlockSpec(memory_space=pltpu.MemorySpace.VMEM),
        scratch_shapes=[pltpu.VMEM((STACK, HW), jnp.float32)],
    )(w_stack, m, x_flat, P, S)

    # Channel pad already applied in-kernel; just drop the lane padding & reshape.
    return out[:, :HW2].reshape(N, N_F_OUT, H2, W2)


def ref_forward(x, weights, biases):
    """Pure-JAX reference of Unit.forward (for correctness check)."""
    Y = x
    for j in range(N_BLOCKS):
        z = lax.conv_general_dilated(
            Y, weights[j], window_strides=(1, 1), padding=((1, 1), (1, 1)),
            dimension_numbers=("NCHW", "OIHW", "NCHW")) + biases[j][None, :, None, None]
        Y = Y + H_STEP * jnp.where(z > 0, z, NEG_SLOPE * z)
    p = lax.reduce_window(Y, 0.0, lax.add, (1, 1, KS_POOL, KS_POOL),
                          (1, 1, STRD_POOL, STRD_POOL), "VALID") / float(KS_POOL * KS_POOL)
    if BOTH_BORDER_PAD:
        pad = (N_F_OUT - N_F_IN) // 2
        p = jnp.pad(p, ((0, 0), (pad, pad), (0, 0), (0, 0)))
    else:
        pad = N_F_OUT - N_F_IN
        p = jnp.pad(p, ((0, 0), (0, pad), (0, 0), (0, 0)))
    return p


if __name__ == "__main__":
    key = jax.random.PRNGKey(0)
    kx, kw, kb = jax.random.split(key, 3)
    x = jax.random.normal(kx, (BATCH, N_F_IN, IMG, IMG), jnp.float32)
    # NOTE: the PyTorch __init__ zero-fills the conv weights (my_init_weight);
    # we use small deterministic random weights instead so the conv path is
    # actually exercised.  Biases keep their (random) init in PyTorch too.
    weights = 0.1 * jax.random.normal(kw, (N_BLOCKS, N_F_IN, N_F_IN, KS, KS), jnp.float32)
    biases = 0.1 * jax.random.normal(kb, (N_BLOCKS, N_F_IN), jnp.float32)

    out = jax.block_until_ready(unit_forward(x, weights, biases))
    ref = ref_forward(x, weights, biases)

    assert out.shape == (BATCH, N_F_OUT, IMG // STRD_POOL, IMG // STRD_POOL)
    err = float(jnp.max(jnp.abs(out - ref)))
    assert jnp.allclose(out, ref, atol=2e-3, rtol=2e-3), err
    print("KERNEL_OK")
</pallas_src>

<mosaic_0001>
module attributes {stable_mosaic.version = 11 : i64} {
  func.func @unit_kernel(%arg0: memref<2x8x80xf32, #tpu.memory_space<vmem>>, %arg1: memref<9x8x256xf32, #tpu.memory_space<vmem>>, %arg2: memref<8x256xf32, #tpu.memory_space<vmem>>, %arg3: memref<256x128xf32, #tpu.memory_space<vmem>>, %arg4: memref<16x8xf32, #tpu.memory_space<vmem>>, %arg5: memref<16x128xf32, #tpu.memory_space<vmem>>, %arg6: memref<80x256xf32, #tpu.memory_space<vmem>>) attributes {dimension_semantics = [], scalar_prefetch = 0 : i64, scratch_operands = 1 : i64, tpu.core_type = #tpu.core_type<tc>} {
    %0 = tpu.iota {dimensions = array<i32: 0>} : vector<8x256xi32>
    %c0_i32 = arith.constant 0 : i32
    %1 = vector.broadcast %c0_i32 : i32 to vector<8x256xi32>
    %2 = arith.cmpi eq, %0, %1 : vector<8x256xi32>
    %cst = arith.constant 1.000000e+00 : f32
    %cst_0 = arith.constant 0.000000e+00 : f32
    %3 = vector.broadcast %cst : f32 to vector<8x256xf32>
    %4 = vector.broadcast %cst_0 : f32 to vector<8x256xf32>
    %5 = arith.select %2, %3, %4 : vector<8x256xi1>, vector<8x256xf32>
    %c72 = arith.constant 72 : index
    %c0 = arith.constant 0 : index
    %6 = vector.load %arg6[%c72, %c0] : memref<80x256xf32, #tpu.memory_space<vmem>>, vector<8x256xf32>
    tpu.vector_store %arg6[%c72, %c0], %5 {strides = array<i32>} : memref<80x256xf32, #tpu.memory_space<vmem>>, vector<8x256xf32>,
    %c0_1 = arith.constant 0 : index
    %c0_2 = arith.constant 0 : index
    %7 = vector.load %arg2[%c0_1, %c0_2] : memref<8x256xf32, #tpu.memory_space<vmem>>, vector<8x256xf32>
    %c17_i32 = arith.constant 17 : i32
    %8 = tpu.dynamic_rotate %7 by %c17_i32 dim 1 : vector<8x256xf32>, i32 -> vector<8x256xf32>
    %c0_3 = arith.constant 0 : index
    %c0_4 = arith.constant 0 : index
    %c0_5 = arith.constant 0 : index
    %9 = vector.load %arg1[%c0_3, %c0_4, %c0_5] : memref<9x8x256xf32, #tpu.memory_space<vmem>>, vector<1x8x256xf32>
    %10 = vector.shape_cast %9 : vector<1x8x256xf32> to vector<8x256xf32>
    %11 = arith.mulf %8, %10 : vector<8x256xf32>
    %c0_6 = arith.constant 0 : index
    %c0_7 = arith.constant 0 : index
    %12 = vector.load %arg6[%c0_6, %c0_7] : memref<80x256xf32, #tpu.memory_space<vmem>>, vector<8x256xf32>
    tpu.vector_store %arg6[%c0_6, %c0_7], %11 {strides = array<i32>} : memref<80x256xf32, #tpu.memory_space<vmem>>, vector<8x256xf32>,
    %c16_i32 = arith.constant 16 : i32
    %13 = tpu.dynamic_rotate %7 by %c16_i32 dim 1 : vector<8x256xf32>, i32 -> vector<8x256xf32>
    %c1 = arith.constant 1 : index
    %c0_8 = arith.constant 0 : index
    %c0_9 = arith.constant 0 : index
    %14 = vector.load %arg1[%c1, %c0_8, %c0_9] : memref<9x8x256xf32, #tpu.memory_space<vmem>>, vector<1x8x256xf32>
    %15 = vector.shape_cast %14 : vector<1x8x256xf32> to vector<8x256xf32>
    %16 = arith.mulf %13, %15 : vector<8x256xf32>
    %c8 = arith.constant 8 : index
    %c0_10 = arith.constant 0 : index
    %17 = vector.load %arg6[%c8, %c0_10] : memref<80x256xf32, #tpu.memory_space<vmem>>, vector<8x256xf32>
    tpu.vector_store %arg6[%c8, %c0_10], %16 {strides = array<i32>} : memref<80x256xf32, #tpu.memory_space<vmem>>, vector<8x256xf32>,
    %c15_i32 = arith.constant 15 : i32
    %18 = tpu.dynamic_rotate %7 by %c15_i32 dim 1 : vector<8x256xf32>, i32 -> vector<8x256xf32>
    %c2 = arith.constant 2 : index
    %c0_11 = arith.constant 0 : index
    %c0_12 = arith.constant 0 : index
    %19 = vector.load %arg1[%c2, %c0_11, %c0_12] : memref<9x8x256xf32, #tpu.memory_space<vmem>>, vector<1x8x256xf32>
    %20 = vector.shape_cast %19 : vector<1x8x256xf32> to vector<8x256xf32>
    %21 = arith.mulf %18, %20 : vector<8x256xf32>
    %c16 = arith.constant 16 : index
    %c0_13 = arith.constant 0 : index
    %22 = vector.load %arg6[%c16, %c0_13] : memref<80x256xf32, #tpu.memory_space<vmem>>, vector<8x256xf32>
    tpu.vector_store %arg6[%c16, %c0_13], %21 {strides = array<i32>} : memref<80x256xf32, #tpu.memory_space<vmem>>, vector<8x256xf32>,
    %c1_i32 = arith.constant 1 : i32
    %23 = tpu.dynamic_rotate %7 by %c1_i32 dim 1 : vector<8x256xf32>, i32 -> vector<8x256xf32>
    %c3 = arith.constant 3 : index
    %c0_14 = arith.constant 0 : index
    %c0_15 = arith.constant 0 : index
    %24 = vector.load %arg1[%c3, %c0_14, %c0_15] : memref<9x8x256xf32, #tpu.memory_space<vmem>>, vector<1x8x256xf32>
    %25 = vector.shape_cast %24 : vector<1x8x256xf32> to vector<8x256xf32>
    %26 = arith.mulf %23, %25 : vector<8x256xf32>
    %c24 = arith.constant 24 : index
    %c0_16 = arith.constant 0 : index
    %27 = vector.load %arg6[%c24, %c0_16] : memref<80x256xf32, #tpu.memory_space<vmem>>, vector<8x256xf32>
    tpu.vector_store %arg6[%c24, %c0_16], %26 {strides = array<i32>} : memref<80x256xf32, #tpu.memory_space<vmem>>, vector<8x256xf32>,
    %c32 = arith.constant 32 : index
    %c0_17 = arith.constant 0 : index
    %28 = vector.load %arg6[%c32, %c0_17] : memref<80x256xf32, #tpu.memory_space<vmem>>, vector<8x256xf32>
    tpu.vector_store %arg6[%c32, %c0_17], %7 {strides = array<i32>} : memref<80x256xf32, #tpu.memory_space<vmem>>, vector<8x256xf32>,
    %c255_i32 = arith.constant 255 : i32
    %29 = tpu.dynamic_rotate %7 by %c255_i32 dim 1 : vector<8x256xf32>, i32 -> vector<8x256xf32>
    %c5 = arith.constant 5 : index
    %c0_18 = arith.constant 0 : index
    %c0_19 = arith.constant 0 : index
    %30 = vector.load %arg1[%c5, %c0_18, %c0_19] : memref<9x8x256xf32, #tpu.memory_space<vmem>>, vector<1x8x256xf32>
    %31 = vector.shape_cast %30 : vector<1x8x256xf32> to vector<8x256xf32>
    %32 = arith.mulf %29, %31 : vector<8x256xf32>
    %c40 = arith.constant 40 : index
    %c0_20 = arith.constant 0 : index
    %33 = vector.load %arg6[%c40, %c0_20] : memref<80x256xf32, #tpu.memory_space<vmem>>, vector<8x256xf32>
    tpu.vector_store %arg6[%c40, %c0_20], %32 {strides = array<i32>} : memref<80x256xf32, #tpu.memory_space<vmem>>, vector<8x256xf32>,
    %c241_i32 = arith.constant 241 : i32
    %34 = tpu.dynamic_rotate %7 by %c241_i32 dim 1 : vector<8x256xf32>, i32 -> vector<8x256xf32>
    %c6 = arith.constant 6 : index
    %c0_21 = arith.constant 0 : index
    %c0_22 = arith.constant 0 : index
    %35 = vector.load %arg1[%c6, %c0_21, %c0_22] : memref<9x8x256xf32, #tpu.memory_space<vmem>>, vector<1x8x256xf32>
    %36 = vector.shape_cast %35 : vector<1x8x256xf32> to vector<8x256xf32>
    %37 = arith.mulf %34, %36 : vector<8x256xf32>
    %c48 = arith.constant 48 : index
    %c0_23 = arith.constant 0 : index
    %38 = vector.load %arg6[%c48, %c0_23] : memref<80x256xf32, #tpu.memory_space<vmem>>, vector<8x256xf32>
    tpu.vector_store %arg6[%c48, %c0_23], %37 {strides = array<i32>} : memref<80x256xf32, #tpu.memory_space<vmem>>, vector<8x256xf32>,
    %c240_i32 = arith.constant 240 : i32
    %39 = tpu.dynamic_rotate %7 by %c240_i32 dim 1 : vector<8x256xf32>, i32 -> vector<8x256xf32>
    %c7 = arith.constant 7 : index
    %c0_24 = arith.constant 0 : index
    %c0_25 = arith.constant 0 : index
    %40 = vector.load %arg1[%c7, %c0_24, %c0_25] : memref<9x8x256xf32, #tpu.memory_space<vmem>>, vector<1x8x256xf32>
    %41 = vector.shape_cast %40 : vector<1x8x256xf32> to vector<8x256xf32>
    %42 = arith.mulf %39, %41 : vector<8x256xf32>
    %c56 = arith.constant 56 : index
    %c0_26 = arith.constant 0 : index
    %43 = vector.load %arg6[%c56, %c0_26] : memref<80x256xf32, #tpu.memory_space<vmem>>, vector<8x256xf32>
    tpu.vector_store %arg6[%c56, %c0_26], %42 {strides = array<i32>} : memref<80x256xf32, #tpu.memory_space<vmem>>, vector<8x256xf32>,
    %c239_i32 = arith.constant 239 : i32
    %44 = tpu.dynamic_rotate %7 by %c239_i32 dim 1 : vector<8x256xf32>, i32 -> vector<8x256xf32>
    %c8_27 = arith.constant 8 : index
    %c0_28 = arith.constant 0 : index
    %c0_29 = arith.constant 0 : index
    %45 = vector.load %arg1[%c8_27, %c0_28, %c0_29] : memref<9x8x256xf32, #tpu.memory_space<vmem>>, vector<1x8x256xf32>
    %46 = vector.shape_cast %45 : vector<1x8x256xf32> to vector<8x256xf32>
    %47 = arith.mulf %44, %46 : vector<8x256xf32>
    %c64 = arith.constant 64 : index
    %c0_30 = arith.constant 0 : index
    %48 = vector.load %arg6[%c64, %c0_30] : memref<80x256xf32, #tpu.memory_space<vmem>>, vector<8x256xf32>
    tpu.vector_store %arg6[%c64, %c0_30], %47 {strides = array<i32>} : memref<80x256xf32, #tpu.memory_space<vmem>>, vector<8x256xf32>,
    %c0_31 = arith.constant 0 : index
    %c0_32 = arith.constant 0 : index
    %c0_33 = arith.constant 0 : index
    %49 = vector.load %arg0[%c0_31, %c0_32, %c0_33] : memref<2x8x80xf32, #tpu.memory_space<vmem>>, vector<1x8x80xf32>
    %50 = vector.shape_cast %49 : vector<1x8x80xf32> to vector<8x80xf32>
    %c0_34 = arith.constant 0 : index
    %c0_35 = arith.constant 0 : index
    %51 = vector.load %arg6[%c0_34, %c0_35] : memref<80x256xf32, #tpu.memory_space<vmem>>, vector<80x256xf32>
    %cst_36 = arith.constant dense<0.000000e+00> : vector<8x256xf32>
    %52 = tpu.matmul %50, %51, %cst_36 {dimension_numbers = #tpu.dot_dimension_numbers<[1], [0], [0], [1], [0, 0, 1, 1], [], []>} : vector<8x80xf32>, vector<80x256xf32>, vector<8x256xf32> -> vector<8x256xf32>
    %cst_37 = arith.constant 0.00999999977 : f32
    %53 = vector.broadcast %cst_37 : f32 to vector<8x256xf32>
    %54 = arith.mulf %53, %52 : vector<8x256xf32>
    %55 = arith.maximumf %52, %54 : vector<8x256xf32>
    %56 = arith.addf %7, %55 : vector<8x256xf32>
    %c17_i32_38 = arith.constant 17 : i32
    %57 = tpu.dynamic_rotate %56 by %c17_i32_38 dim 1 : vector<8x256xf32>, i32 -> vector<8x256xf32>
    %c0_39 = arith.constant 0 : index
    %c0_40 = arith.constant 0 : index
    %c0_41 = arith.constant 0 : index
    %58 = vector.load %arg1[%c0_39, %c0_40, %c0_41] : memref<9x8x256xf32, #tpu.memory_space<vmem>>, vector<1x8x256xf32>
    %59 = vector.shape_cast %58 : vector<1x8x256xf32> to vector<8x256xf32>
    %60 = arith.mulf %57, %59 : vector<8x256xf32>
    %c0_42 = arith.constant 0 : index
    %c0_43 = arith.constant 0 : index
    %61 = vector.load %arg6[%c0_42, %c0_43] : memref<80x256xf32, #tpu.memory_space<vmem>>, vector<8x256xf32>
    tpu.vector_store %arg6[%c0_42, %c0_43], %60 {strides = array<i32>} : memref<80x256xf32, #tpu.memory_space<vmem>>, vector<8x256xf32>,
    %c16_i32_44 = arith.constant 16 : i32
    %62 = tpu.dynamic_rotate %56 by %c16_i32_44 dim 1 : vector<8x256xf32>, i32 -> vector<8x256xf32>
    %c1_45 = arith.constant 1 : index
    %c0_46 = arith.constant 0 : index
    %c0_47 = arith.constant 0 : index
    %63 = vector.load %arg1[%c1_45, %c0_46, %c0_47] : memref<9x8x256xf32, #tpu.memory_space<vmem>>, vector<1x8x256xf32>
    %64 = vector.shape_cast %63 : vector<1x8x256xf32> to vector<8x256xf32>
    %65 = arith.mulf %62, %64 : vector<8x256xf32>
    %c8_48 = arith.constant 8 : index
    %c0_49 = arith.constant 0 : index
    %66 = vector.load %arg6[%c8_48, %c0_49] : memref<80x256xf32, #tpu.memory_space<vmem>>, vector<8x256xf32>
    tpu.vector_store %arg6[%c8_48, %c0_49], %65 {strides = array<i32>} : memref<80x256xf32, #tpu.memory_space<vmem>>, vector<8x256xf32>,
    %c15_i32_50 = arith.constant 15 : i32
    %67 = tpu.dynamic_rotate %56 by %c15_i32_50 dim 1 : vector<8x256xf32>, i32 -> vector<8x256xf32>
    %c2_51 = arith.constant 2 : index
    %c0_52 = arith.constant 0 : index
    %c0_53 = arith.constant 0 : index
    %68 = vector.load %arg1[%c2_51, %c0_52, %c0_53] : memref<9x8x256xf32, #tpu.memory_space<vmem>>, vector<1x8x256xf32>
    %69 = vector.shape_cast %68 : vector<1x8x256xf32> to vector<8x256xf32>
    %70 = arith.mulf %67, %69 : vector<8x256xf32>
    %c16_54 = arith.constant 16 : index
    %c0_55 = arith.constant 0 : index
    %71 = vector.load %arg6[%c16_54, %c0_55] : memref<80x256xf32, #tpu.memory_space<vmem>>, vector<8x256xf32>
    tpu.vector_store %arg6[%c16_54, %c0_55], %70 {strides = array<i32>} : memref<80x256xf32, #tpu.memory_space<vmem>>, vector<8x256xf32>,
    %c1_i32_56 = arith.constant 1 : i32
    %72 = tpu.dynamic_rotate %56 by %c1_i32_56 dim 1 : vector<8x256xf32>, i32 -> vector<8x256xf32>
    %c3_57 = arith.constant 3 : index
    %c0_58 = arith.constant 0 : index
    %c0_59 = arith.constant 0 : index
    %73 = vector.load %arg1[%c3_57, %c0_58, %c0_59] : memref<9x8x256xf32, #tpu.memory_space<vmem>>, vector<1x8x256xf32>
    %74 = vector.shape_cast %73 : vector<1x8x256xf32> to vector<8x256xf32>
    %75 = arith.mulf %72, %74 : vector<8x256xf32>
    %c24_60 = arith.constant 24 : index
    %c0_61 = arith.constant 0 : index
    %76 = vector.load %arg6[%c24_60, %c0_61] : memref<80x256xf32, #tpu.memory_space<vmem>>, vector<8x256xf32>
    tpu.vector_store %arg6[%c24_60, %c0_61], %75 {strides = array<i32>} : memref<80x256xf32, #tpu.memory_space<vmem>>, vector<8x256xf32>,
    %c32_62 = arith.constant 32 : index
    %c0_63 = arith.constant 0 : index
    %77 = vector.load %arg6[%c32_62, %c0_63] : memref<80x256xf32, #tpu.memory_space<vmem>>, vector<8x256xf32>
    tpu.vector_store %arg6[%c32_62, %c0_63], %56 {strides = array<i32>} : memref<80x256xf32, #tpu.memory_space<vmem>>, vector<8x256xf32>,
    %c255_i32_64 = arith.constant 255 : i32
    %78 = tpu.dynamic_rotate %56 by %c255_i32_64 dim 1 : vector<8x256xf32>, i32 -> vector<8x256xf32>
    %c5_65 = arith.constant 5 : index
    %c0_66 = arith.constant 0 : index
    %c0_67 = arith.constant 0 : index
    %79 = vector.load %arg1[%c5_65, %c0_66, %c0_67] : memref<9x8x256xf32, #tpu.memory_space<vmem>>, vector<1x8x256xf32>
    %80 = vector.shape_cast %79 : vector<1x8x256xf32> to vector<8x256xf32>
    %81 = arith.mulf %78, %80 : vector<8x256xf32>
    %c40_68 = arith.constant 40 : index
    %c0_69 = arith.constant 0 : index
    %82 = vector.load %arg6[%c40_68, %c0_69] : memref<80x256xf32, #tpu.memory_space<vmem>>, vector<8x256xf32>
    tpu.vector_store %arg6[%c40_68, %c0_69], %81 {strides = array<i32>} : memref<80x256xf32, #tpu.memory_space<vmem>>, vector<8x256xf32>,
    %c241_i32_70 = arith.constant 241 : i32
    %83 = tpu.dynamic_rotate %56 by %c241_i32_70 dim 1 : vector<8x256xf32>, i32 -> vector<8x256xf32>
    %c6_71 = arith.constant 6 : index
    %c0_72 = arith.constant 0 : index
    %c0_73 = arith.constant 0 : index
    %84 = vector.load %arg1[%c6_71, %c0_72, %c0_73] : memref<9x8x256xf32, #tpu.memory_space<vmem>>, vector<1x8x256xf32>
    %85 = vector.shape_cast %84 : vector<1x8x256xf32> to vector<8x256xf32>
    %86 = arith.mulf %83, %85 : vector<8x256xf32>
    %c48_74 = arith.constant 48 : index
    %c0_75 = arith.constant 0 : index
    %87 = vector.load %arg6[%c48_74, %c0_75] : memref<80x256xf32, #tpu.memory_space<vmem>>, vector<8x256xf32>
    tpu.vector_store %arg6[%c48_74, %c0_75], %86 {strides = array<i32>} : memref<80x256xf32, #tpu.memory_space<vmem>>, vector<8x256xf32>,
    %c240_i32_76 = arith.constant 240 : i32
    %88 = tpu.dynamic_rotate %56 by %c240_i32_76 dim 1 : vector<8x256xf32>, i32 -> vector<8x256xf32>
    %c7_77 = arith.constant 7 : index
    %c0_78 = arith.constant 0 : index
    %c0_79 = arith.constant 0 : index
    %89 = vector.load %arg1[%c7_77, %c0_78, %c0_79] : memref<9x8x256xf32, #tpu.memory_space<vmem>>, vector<1x8x256xf32>
    %90 = vector.shape_cast %89 : vector<1x8x256xf32> to vector<8x256xf32>
    %91 = arith.mulf %88, %90 : vector<8x256xf32>
    %c56_80 = arith.constant 56 : index
    %c0_81 = arith.constant 0 : index
    %92 = vector.load %arg6[%c56_80, %c0_81] : memref<80x256xf32, #tpu.memory_space<vmem>>, vector<8x256xf32>
    tpu.vector_store %arg6[%c56_80, %c0_81], %91 {strides = array<i32>} : memref<80x256xf32, #tpu.memory_space<vmem>>, vector<8x256xf32>,
    %c239_i32_82 = arith.constant 239 : i32
    %93 = tpu.dynamic_rotate %56 by %c239_i32_82 dim 1 : vector<8x256xf32>, i32 -> vector<8x256xf32>
    %c8_83 = arith.constant 8 : index
    %c0_84 = arith.constant 0 : index
    %c0_85 = arith.constant 0 : index
    %94 = vector.load %arg1[%c8_83, %c0_84, %c0_85] : memref<9x8x256xf32, #tpu.memory_space<vmem>>, vector<1x8x256xf32>
    %95 = vector.shape_cast %94 : vector<1x8x256xf32> to vector<8x256xf32>
    %96 = arith.mulf %93, %95 : vector<8x256xf32>
    %c64_86 = arith.constant 64 : index
    %c0_87 = arith.constant 0 : index
    %97 = vector.load %arg6[%c64_86, %c0_87] : memref<80x256xf32, #tpu.memory_space<vmem>>, vector<8x256xf32>
    tpu.vector_store %arg6[%c64_86, %c0_87], %96 {strides = array<i32>} : memref<80x256xf32, #tpu.memory_space<vmem>>, vector<8x256xf32>,
    %c1_88 = arith.constant 1 : index
    %c0_89 = arith.constant 0 : index
    %c0_90 = arith.constant 0 : index
    %98 = vector.load %arg0[%c1_88, %c0_89, %c0_90] : memref<2x8x80xf32, #tpu.memory_space<vmem>>, vector<1x8x80xf32>
    %99 = vector.shape_cast %98 : vector<1x8x80xf32> to vector<8x80xf32>
    %c0_91 = arith.constant 0 : index
    %c0_92 = arith.constant 0 : index
    %100 = vector.load %arg6[%c0_91, %c0_92] : memref<80x256xf32, #tpu.memory_space<vmem>>, vector<80x256xf32>
    %cst_93 = arith.constant dense<0.000000e+00> : vector<8x256xf32>
    %101 = tpu.matmul %99, %100, %cst_93 {dimension_numbers = #tpu.dot_dimension_numbers<[1], [0], [0], [1], [0, 0, 1, 1], [], []>} : vector<8x80xf32>, vector<80x256xf32>, vector<8x256xf32> -> vector<8x256xf32>
    %cst_94 = arith.constant 0.00999999977 : f32
    %102 = vector.broadcast %cst_94 : f32 to vector<8x256xf32>
    %103 = arith.mulf %102, %101 : vector<8x256xf32>
    %104 = arith.maximumf %101, %103 : vector<8x256xf32>
    %105 = arith.addf %56, %104 : vector<8x256xf32>
    %c0_95 = arith.constant 0 : index
    %c0_96 = arith.constant 0 : index
    %106 = vector.load %arg3[%c0_95, %c0_96] : memref<256x128xf32, #tpu.memory_space<vmem>>, vector<256x128xf32>
    %cst_97 = arith.constant dense<0.000000e+00> : vector<8x128xf32>
    %107 = tpu.matmul %105, %106, %cst_97 {dimension_numbers = #tpu.dot_dimension_numbers<[1], [0], [0], [1], [0, 0, 1, 1], [], []>} : vector<8x256xf32>, vector<256x128xf32>, vector<8x128xf32> -> vector<8x128xf32>
    %c0_98 = arith.constant 0 : index
    %c0_99 = arith.constant 0 : index
    %108 = vector.load %arg4[%c0_98, %c0_99] : memref<16x8xf32, #tpu.memory_space<vmem>>, vector<16x8xf32>
    %cst_100 = arith.constant dense<0.000000e+00> : vector<16x128xf32>
    %109 = tpu.matmul %108, %107, %cst_100 {dimension_numbers = #tpu.dot_dimension_numbers<[1], [0], [0], [1], [0, 0, 1, 1], [], []>} : vector<16x8xf32>, vector<8x128xf32>, vector<16x128xf32> -> vector<16x128xf32>
    %c0_101 = arith.constant 0 : index
    %c0_102 = arith.constant 0 : index
    %110 = vector.load %arg5[%c0_101, %c0_102] : memref<16x128xf32, #tpu.memory_space<vmem>>, vector<16x128xf32>
    tpu.vector_store %arg5[%c0_101, %c0_102], %109 {strides = array<i32>} : memref<16x128xf32, #tpu.memory_space<vmem>>, vector<16x128xf32>,
    return
  }
}

</mosaic_0001>

<llo_original>
// kernel: unit_forward.1
$region0: #{unit_forward.1}
  #allocation0 [shape = 'u32[]', space=smem, size = 0x4, offset = 0x4, fixed_abs, tag = 'smem constant byte address 0x4 - core index']
  #allocation1 [shape = 'u32[144,128]{1,0:T(1,128)}', space=vmem, size = 0x12000, scoped, tag = 'internal scratch']
  #allocation2 [shape = 'f32[80,256]{1,0:T(8,128)}', space=vmem, size = 0x14000, scoped, tag = 'scratch operand']
  %s0 = inlined_call_operand.vmem [shape: f32[2,8,80], index: 0, kind: input, shape index: {}]
  %s1 = inlined_call_operand.vmem [shape: f32[9,8,256], index: 1, kind: input, shape index: {}]
  %s2 = inlined_call_operand.vmem [shape: f32[8,256], index: 2, kind: input, shape index: {}]
  %s3 = inlined_call_operand.vmem [shape: f32[256,128], index: 3, kind: input, shape index: {}]
  %s4 = inlined_call_operand.vmem [shape: f32[16,8], index: 4, kind: input, shape index: {}]
  %s5 = inlined_call_operand.vmem [shape: f32[16,128], index: 5, kind: output, shape index: {}]
  %s6 = sld [smem:[#allocation0]]
  $region30: #{unit_forward.1} parent=0
    _
  %s8 = ssub.s32 1, %s6
  %s9 = scalar_select 0, %s8, %s6
  // Predicated region
  $region2: #{unit_forward.1} parent=0 // pred_check
    _
  $region3: #{unit_forward.1} parent=0 // pred_check_branch
    %11 = sbr.rel (0) target = $region5
  $region4: #{unit_forward.1} parent=0 // pred_region
    _
  $region5: #{unit_forward.1} parent=0 // pred_fallthru
    _
  // Predicated region
  $region6: #{unit_forward.1} parent=0 // pred_check
    _
  $region7: #{unit_forward.1} parent=0 // pred_check_branch
    %13 = sbr.rel (0) target = $region9
  $region8: #{unit_forward.1} parent=0 // pred_region
    _
  $region9: #{unit_forward.1} parent=0 // pred_fallthru
    _
  // Predicated region
  $region10: #{unit_forward.1} parent=0 // pred_check
    _
  $region11: #{unit_forward.1} parent=0 // pred_check_branch
    %15 = sbr.rel (0) target = $region13
  $region12: #{unit_forward.1} parent=0 // pred_region
    _
  $region13: #{unit_forward.1} parent=0 // pred_fallthru
    _
  // Predicated region
  $region14: #{unit_forward.1} parent=0 // pred_check
    _
  $region15: #{unit_forward.1} parent=0 // pred_check_branch
    %17 = sbr.rel (0) target = $region17
  $region16: #{unit_forward.1} parent=0 // pred_region
    _
  $region17: #{unit_forward.1} parent=0 // pred_fallthru
    _
  // Predicated region
  $region18: #{unit_forward.1} parent=0 // pred_check
    _
  $region19: #{unit_forward.1} parent=0 // pred_check_branch
    %19 = sbr.rel (0) target = $region21
  $region20: #{unit_forward.1} parent=0 // pred_region
    _
  $region21: #{unit_forward.1} parent=0 // pred_fallthru
    _
  %v20 = vlaneseq
  %v21 = vshrl.u32 %v20, 7
  %vm22 = vcmp.eq.s32.totalorder %v21, 0
  %v23 = vsel %vm22, 1.0, 0.0
  %24 = vst [vmem:[#allocation2 + $0x90] sm:$0xff] %v23
  %25 = vst [vmem:[#allocation2 + $0x98] sm:$0xff] %v23
  %v26 = vld [vmem:[%s2] sm:$0xff]
  %v27 = vld [vmem:[%s2 + $0x8] sm:$0xff]
  %28 = vrot.lane.b32.xlu0 %v26, 17
  %v29 = vpop.permute.xlu0 %28
  %30 = vrot.lane.b32.xlu0 %v27, 17
  %v31 = vpop.permute.xlu0 %30
  %v32 = vlaneseq
  %v33 = vand.u32 %v32, 127
  %vm34 = vcmp.lt.s32.totalorder %v33, 17
  %v35 = vsel %vm34, %v29, %v31
  %v36 = vsel %vm34, %v31, %v29
  %v37 = vld [vmem:[%s1] sm:$0xff]
  %v38 = vld [vmem:[%s1 + $0x8] sm:$0xff]
  %v39 = vmul.f32 %v36, %v37
  %v40 = vmul.f32 %v35, %v38
  %41 = vst [vmem:[#allocation2] sm:$0xff] %v39
  %42 = vst [vmem:[#allocation2 + $0x8] sm:$0xff] %v40
  %43 = vrot.lane.b32.xlu0 %v26, 16
  %v44 = vpop.permute.xlu0 %43
  %45 = vrot.lane.b32.xlu0 %v27, 16
  %v46 = vpop.permute.xlu0 %45
  %vm47 = vcmp.lt.s32.totalorder %v33, 16
  %v48 = vsel %vm47, %v44, %v46
  %v49 = vsel %vm47, %v46, %v44
  %s50 = scalar_lea.vmem %s1, 16
  %v51 = vld [vmem:[%s50] sm:$0xff]
  %v52 = vld [vmem:[%s50 + $0x8] sm:$0xff]
  %v53 = vmul.f32 %v49, %v51
  %v54 = vmul.f32 %v48, %v52
  %55 = vst [vmem:[#allocation2 + $0x10] sm:$0xff] %v53
  %56 = vst [vmem:[#allocation2 + $0x18] sm:$0xff] %v54
  %57 = vrot.lane.b32.xlu0 %v26, 15
  %v58 = vpop.permute.xlu0 %57
  %59 = vrot.lane.b32.xlu0 %v27, 15
  %v60 = vpop.permute.xlu0 %59
  %vm61 = vcmp.lt.s32.totalorder %v33, 15
  %v62 = vsel %vm61, %v58, %v60
  %v63 = vsel %vm61, %v60, %v58
  %s64 = scalar_lea.vmem %s1, 32
  %v65 = vld [vmem:[%s64] sm:$0xff]
  %v66 = vld [vmem:[%s64 + $0x8] sm:$0xff]
  %v67 = vmul.f32 %v63, %v65
  %v68 = vmul.f32 %v62, %v66
  %69 = vst [vmem:[#allocation2 + $0x20] sm:$0xff] %v67
  %70 = vst [vmem:[#allocation2 + $0x28] sm:$0xff] %v68
  %71 = vrot.lane.b32.xlu0 %v26, 1
  %v72 = vpop.permute.xlu0 %71
  %73 = vrot.lane.b32.xlu0 %v27, 1
  %v74 = vpop.permute.xlu0 %73
  %vm75 = vcmp.lt.s32.totalorder %v33, 1
  %v76 = vsel %vm75, %v72, %v74
  %v77 = vsel %vm75, %v74, %v72
  %s78 = scalar_lea.vmem %s1, 48
  %v79 = vld [vmem:[%s78] sm:$0xff]
  %v80 = vld [vmem:[%s78 + $0x8] sm:$0xff]
  %v81 = vmul.f32 %v77, %v79
  %v82 = vmul.f32 %v76, %v80
  %83 = vst [vmem:[#allocation2 + $0x30] sm:$0xff] %v81
  %84 = vst [vmem:[#allocation2 + $0x38] sm:$0xff] %v82
  %85 = vst [vmem:[#allocation2 + $0x40] sm:$0xff] %v26
  %86 = vst [vmem:[#allocation2 + $0x48] sm:$0xff] %v27
  %87 = vrot.lane.b32.xlu0 %v26, 127
  %v88 = vpop.permute.xlu0 %87
  %89 = vrot.lane.b32.xlu0 %v27, 127
  %v90 = vpop.permute.xlu0 %89
  %vm91 = vcmp.lt.s32.totalorder %v33, 127
  %v92 = vsel %vm91, %v88, %v90
  %v93 = vsel %vm91, %v90, %v88
  %s94 = scalar_lea.vmem %s1, 80
  %v95 = vld [vmem:[%s94] sm:$0xff]
  %v96 = vld [vmem:[%s94 + $0x8] sm:$0xff]
  %v97 = vmul.f32 %v92, %v95
  %v98 = vmul.f32 %v93, %v96
  %99 = vst [vmem:[#allocation2 + $0x50] sm:$0xff] %v97
  %100 = vst [vmem:[#allocation2 + $0x58] sm:$0xff] %v98
  %101 = vrot.lane.b32.xlu0 %v26, 113
  %v102 = vpop.permute.xlu0 %101
  %103 = vrot.lane.b32.xlu0 %v27, 113
  %v104 = vpop.permute.xlu0 %103
  %vm105 = vcmp.lt.s32.totalorder %v33, 113
  %v106 = vsel %vm105, %v102, %v104
  %v107 = vsel %vm105, %v104, %v102
  %s108 = scalar_lea.vmem %s1, 96
  %v109 = vld [vmem:[%s108] sm:$0xff]
  %v110 = vld [vmem:[%s108 + $0x8] sm:$0xff]
  %v111 = vmul.f32 %v106, %v109
  %v112 = vmul.f32 %v107, %v110
  %113 = vst [vmem:[#allocation2 + $0x60] sm:$0xff] %v111
  %114 = vst [vmem:[#allocation2 + $0x68] sm:$0xff] %v112
  %115 = vrot.lane.b32.xlu0 %v26, 112
  %v116 = vpop.permute.xlu0 %115
  %117 = vrot.lane.b32.xlu0 %v27, 112
  %v118 = vpop.permute.xlu0 %117
  %vm119 = vcmp.lt.s32.totalorder %v33, 112
  %v120 = vsel %vm119, %v116, %v118
  %v121 = vsel %vm119, %v118, %v116
  %s122 = scalar_lea.vmem %s1, 112
  %v123 = vld [vmem:[%s122] sm:$0xff]
  %v124 = vld [vmem:[%s122 + $0x8] sm:$0xff]
  %v125 = vmul.f32 %v120, %v123
  %v126 = vmul.f32 %v121, %v124
  %127 = vst [vmem:[#allocation2 + $0x70] sm:$0xff] %v125
  %128 = vst [vmem:[#allocation2 + $0x78] sm:$0xff] %v126
  %129 = vrot.lane.b32.xlu0 %v26, 111
  %v130 = vpop.permute.xlu0 %129
  %131 = vrot.lane.b32.xlu0 %v27, 111
  %v132 = vpop.permute.xlu0 %131
  %vm133 = vcmp.lt.s32.totalorder %v33, 111
  %v134 = vsel %vm133, %v130, %v132
  %v135 = vsel %vm133, %v132, %v130
  %s136 = scalar_lea.vmem %s1, 128
  %v137 = vld [vmem:[%s136] sm:$0xff]
  %v138 = vld [vmem:[%s136 + $0x8] sm:$0xff]
  %v139 = vmul.f32 %v134, %v137
  %v140 = vmul.f32 %v135, %v138
  %141 = vst [vmem:[#allocation2 + $0x80] sm:$0xff] %v139
  %142 = vst [vmem:[#allocation2 + $0x88] sm:$0xff] %v140
  %v143 = vld [vmem:[%s0] sm:$0xff]
  %v144 = vld [vmem:[#allocation2] sm:$0xff]
  %v145 = vld [vmem:[#allocation2 + $0x8] sm:$0xff]
  %v146 = vld [vmem:[#allocation2 + $0x10] sm:$0xff]
  %v147 = vld [vmem:[#allocation2 + $0x18] sm:$0xff]
  %v148 = vld [vmem:[#allocation2 + $0x20] sm:$0xff]
  %v149 = vld [vmem:[#allocation2 + $0x28] sm:$0xff]
  %v150 = vld [vmem:[#allocation2 + $0x30] sm:$0xff]
  %v151 = vld [vmem:[#allocation2 + $0x38] sm:$0xff]
  %v152 = vld [vmem:[#allocation2 + $0x40] sm:$0xff]
  %v153 = vld [vmem:[#allocation2 + $0x48] sm:$0xff]
  %v154 = vld [vmem:[#allocation2 + $0x50] sm:$0xff]
  %v155 = vld [vmem:[#allocation2 + $0x58] sm:$0xff]
  %v156 = vld [vmem:[#allocation2 + $0x60] sm:$0xff]
  %v157 = vld [vmem:[#allocation2 + $0x68] sm:$0xff]
  %v158 = vld [vmem:[#allocation2 + $0x70] sm:$0xff]
  %v159 = vld [vmem:[#allocation2 + $0x78] sm:$0xff]
  %v160 = vld [vmem:[#allocation2 + $0x80] sm:$0xff]
  %v161 = vld [vmem:[#allocation2 + $0x88] sm:$0xff]
  %v162 = vld [vmem:[#allocation2 + $0x90] sm:$0xff]
  %v163 = vld [vmem:[#allocation2 + $0x98] sm:$0xff]
  %vm164 = vcmask 654336
  %v166 = vsel %vm164, %v143, 0
  %168 = vmatprep.subr.mxu0 %v145
  %169 = vmatpush1.msra.mxu0 %v144
  %170 = vmatprep.subr.mxu0 %v147
  %171 = vmatpush1.msra.mxu0 %v146
  %172 = vmatprep.subr.mxu0 %v149
  %173 = vmatpush1.msra.mxu0 %v148
  %174 = vmatprep.subr.mxu0 %v151
  %175 = vmatpush1.msra.mxu0 %v150
  %176 = vmatprep.subr.mxu0 %v153
  %177 = vmatpush1.msra.mxu0 %v152
  %178 = vmatprep.subr.mxu0 %v155
  %179 = vmatpush1.msra.mxu0 %v154
  %180 = vmatprep.subr.mxu0 %v157
  %181 = vmatpush1.msra.mxu0 %v156
  %182 = vmatprep.subr.mxu0 %v159
  %183 = vmatpush1.msra.mxu0 %v158
  %184 = vmatprep.subr.mxu0 %v161
  %185 = vmatpush1.msra.mxu0 %v160
  %186 = vmatprep.subr.mxu0 %v163
  %187 = vmatpush1.msra.mxu0 %v162
  %188 = vmatprep.subr.mxu0 0.0
  %189 = vmatpush1.msra.mxu0 0.0
  %190 = vmatprep.subr.mxu0 0.0
  %191 = vmatpush1.msra.mxu0 0.0
  %192 = vmatprep.subr.mxu0 0.0
  %193 = vmatpush1.msra.mxu0 0.0
  %194 = vmatprep.subr.mxu0 0.0
  %195 = vmatpush1.msra.mxu0 0.0
  %196 = vmatprep.subr.mxu0 0.0
  %197 = vmatpush1.msra.mxu0 0.0
  %198 = vmatprep.subr.mxu0 0.0
  %199 = vmatpush1.msra.mxu0 0.0
  %200 = vmatprep.subr.mxu0 0.0
  %201 = vmatpush1.msra.mxu0 0.0
  %202 = vmatprep.subr.mxu0 0.0
  %203 = vmatpush1.msra.mxu0 0.0
  %204 = vmatprep.subr.mxu0 0.0
  %205 = vmatpush1.msra.mxu0 0.0
  %206 = vmatprep.subr.mxu0 0.0
  %207 = vmatpush1.msra.mxu0 0.0
  %208 = vmatprep.subr.mxu0 0.0
  %209 = vmatpush1.msra.mxu0 0.0
  %210 = vmatprep.subr.mxu0 0.0
  %211 = vmatpush1.msra.mxu0 0.0
  %212 = vmatprep.subr.mxu0 0.0
  %213 = vmatpush1.msra.mxu0 0.0
  %214 = vmatprep.subr.mxu0 0.0
  %215 = vmatpush1.msra.mxu0 0.0
  %216 = vmatprep.subr.mxu0 0.0
  %217 = vmatpush1.msra.mxu0 0.0
  %218 = vmatprep.subr.mxu0 0.0
  %219 = vmatpush1.msra.mxu0 0.0
  %220 = vmatprep.subr.mxu0 0.0
  %221 = vmatpush1.msra.mxu0 0.0
  %222 = vmatprep.subr.mxu0 0.0
  %223 = vmatpush1.msra.mxu0 0.0
  %224 = vmatprep.subr.mxu0 0.0
  %225 = vmatpush1.msra.mxu0 0.0
  %226 = vmatprep.subr.mxu0 0.0
  %227 = vmatpush1.msra.mxu0 0.0
  %228 = vmatprep.subr.mxu0 0.0
  %229 = vmatpush1.msra.mxu0 0.0
  %230 = vmatprep.subr.mxu0 0.0
  %231 = vmatpush1.msra.mxu0 0.0
  %232 = vmatprep.mubr.f32.mxu0 0.0
  %233 = vmatmul.mubr.f32.gmra.mrb[0].mxu0 %v166
  %v234 = vpop.f32.mrb[0].mxu0
  %v235 = vadd.f32 0.0, %v234
  %v236 = vpop.f32.mrb[0].mxu0
  %v237 = vadd.f32 0.0, %v236
  %238 = vdwg.mxu0
  %v239 = vmul.f32 %v235, 0.01
  %v240 = vmul.f32 %v237, 0.01
  %v241 = vmax.f32 %v235, %v239
  %v242 = vmax.f32 %v237, %v240
  %v243 = vadd.f32 %v26, %v241
  %v244 = vadd.f32 %v27, %v242
  %245 = vrot.lane.b32.xlu0 %v243, 17
  %v246 = vpop.permute.xlu0 %245
  %247 = vrot.lane.b32.xlu0 %v244, 17
  %v248 = vpop.permute.xlu0 %247
  %v249 = vsel %vm34, %v246, %v248
  %v250 = vsel %vm34, %v248, %v246
  %v251 = vld [vmem:[%s1] sm:$0xff]
  %v252 = vld [vmem:[%s1 + $0x8] sm:$0xff]
  %v253 = vmul.f32 %v250, %v251
  %v254 = vmul.f32 %v249, %v252
  %255 = vst [vmem:[#allocation2] sm:$0xff] %v253
  %256 = vst [vmem:[#allocation2 + $0x8] sm:$0xff] %v254
  %257 = vrot.lane.b32.xlu0 %v243, 16
  %v258 = vpop.permute.xlu0 %257
  %259 = vrot.lane.b32.xlu0 %v244, 16
  %v260 = vpop.permute.xlu0 %259
  %v261 = vsel %vm47, %v258, %v260
  %v262 = vsel %vm47, %v260, %v258
  %v263 = vld [vmem:[%s50] sm:$0xff]
  %v264 = vld [vmem:[%s50 + $0x8] sm:$0xff]
  %v265 = vmul.f32 %v262, %v263
  %v266 = vmul.f32 %v261, %v264
  %267 = vst [vmem:[#allocation2 + $0x10] sm:$0xff] %v265
  %268 = vst [vmem:[#allocation2 + $0x18] sm:$0xff] %v266
  %269 = vrot.lane.b32.xlu0 %v243, 15
  %v270 = vpop.permute.xlu0 %269
  %271 = vrot.lane.b32.xlu0 %v244, 15
  %v272 = vpop.permute.xlu0 %271
  %v273 = vsel %vm61, %v270, %v272
  %v274 = vsel %vm61, %v272, %v270
  %v275 = vld [vmem:[%s64] sm:$0xff]
  %v276 = vld [vmem:[%s64 + $0x8] sm:$0xff]
  %v277 = vmul.f32 %v274, %v275
  %v278 = vmul.f32 %v273, %v276
  %279 = vst [vmem:[#allocation2 + $0x20] sm:$0xff] %v277
  %280 = vst [vmem:[#allocation2 + $0x28] sm:$0xff] %v278
  %281 = vrot.lane.b32.xlu0 %v243, 1
  %v282 = vpop.permute.xlu0 %281
  %283 = vrot.lane.b32.xlu0 %v244, 1
  %v284 = vpop.permute.xlu0 %283
  %v285 = vsel %vm75, %v282, %v284
  %v286 = vsel %vm75, %v284, %v282
  %v287 = vld [vmem:[%s78] sm:$0xff]
  %v288 = vld [vmem:[%s78 + $0x8] sm:$0xff]
  %v289 = vmul.f32 %v286, %v287
  %v290 = vmul.f32 %v285, %v288
  %291 = vst [vmem:[#allocation2 + $0x30] sm:$0xff] %v289
  %292 = vst [vmem:[#allocation2 + $0x38] sm:$0xff] %v290
  %293 = vst [vmem:[#allocation2 + $0x40] sm:$0xff] %v243
  %294 = vst [vmem:[#allocation2 + $0x48] sm:$0xff] %v244
  %295 = vrot.lane.b32.xlu0 %v243, 127
  %v296 = vpop.permute.xlu0 %295
  %297 = vrot.lane.b32.xlu0 %v244, 127
  %v298 = vpop.permute.xlu0 %297
  %v299 = vsel %vm91, %v296, %v298
  %v300 = vsel %vm91, %v298, %v296
  %v301 = vld [vmem:[%s94] sm:$0xff]
  %v302 = vld [vmem:[%s94 + $0x8] sm:$0xff]
  %v303 = vmul.f32 %v299, %v301
  %v304 = vmul.f32 %v300, %v302
  %305 = vst [vmem:[#allocation2 + $0x50] sm:$0xff] %v303
  %306 = vst [vmem:[#allocation2 + $0x58] sm:$0xff] %v304
  %307 = vrot.lane.b32.xlu0 %v243, 113
  %v308 = vpop.permute.xlu0 %307
  %309 = vrot.lane.b32.xlu0 %v244, 113
  %v310 = vpop.permute.xlu0 %309
  %v311 = vsel %vm105, %v308, %v310
  %v312 = vsel %vm105, %v310, %v308
  %v313 = vld [vmem:[%s108] sm:$0xff]
  %v314 = vld [vmem:[%s108 + $0x8] sm:$0xff]
  %v315 = vmul.f32 %v311, %v313
  %v316 = vmul.f32 %v312, %v314
  %317 = vst [vmem:[#allocation2 + $0x60] sm:$0xff] %v315
  %318 = vst [vmem:[#allocation2 + $0x68] sm:$0xff] %v316
  %319 = vrot.lane.b32.xlu0 %v243, 112
  %v320 = vpop.permute.xlu0 %319
  %321 = vrot.lane.b32.xlu0 %v244, 112
  %v322 = vpop.permute.xlu0 %321
  %v323 = vsel %vm119, %v320, %v322
  %v324 = vsel %vm119, %v322, %v320
  %v325 = vld [vmem:[%s122] sm:$0xff]
  %v326 = vld [vmem:[%s122 + $0x8] sm:$0xff]
  %v327 = vmul.f32 %v323, %v325
  %v328 = vmul.f32 %v324, %v326
  %329 = vst [vmem:[#allocation2 + $0x70] sm:$0xff] %v327
  %330 = vst [vmem:[#allocation2 + $0x78] sm:$0xff] %v328
  %331 = vrot.lane.b32.xlu0 %v243, 111
  %v332 = vpop.permute.xlu0 %331
  %333 = vrot.lane.b32.xlu0 %v244, 111
  %v334 = vpop.permute.xlu0 %333
  %v335 = vsel %vm133, %v332, %v334
  %v336 = vsel %vm133, %v334, %v332
  %v337 = vld [vmem:[%s136] sm:$0xff]
  %v338 = vld [vmem:[%s136 + $0x8] sm:$0xff]
  %v339 = vmul.f32 %v335, %v337
  %v340 = vmul.f32 %v336, %v338
  %341 = vst [vmem:[#allocation2 + $0x80] sm:$0xff] %v339
  %342 = vst [vmem:[#allocation2 + $0x88] sm:$0xff] %v340
  %s343 = scalar_lea.vmem %s0, 8
  %v344 = vld [vmem:[%s343] sm:$0xff]
  %v345 = vld [vmem:[#allocation2] sm:$0xff]
  %v346 = vld [vmem:[#allocation2 + $0x8] sm:$0xff]
  %v347 = vld [vmem:[#allocation2 + $0x10] sm:$0xff]
  %v348 = vld [vmem:[#allocation2 + $0x18] sm:$0xff]
  %v349 = vld [vmem:[#allocation2 + $0x20] sm:$0xff]
  %v350 = vld [vmem:[#allocation2 + $0x28] sm:$0xff]
  %v351 = vld [vmem:[#allocation2 + $0x30] sm:$0xff]
  %v352 = vld [vmem:[#allocation2 + $0x38] sm:$0xff]
  %v353 = vld [vmem:[#allocation2 + $0x40] sm:$0xff]
  %v354 = vld [vmem:[#allocation2 + $0x48] sm:$0xff]
  %v355 = vld [vmem:[#allocation2 + $0x50] sm:$0xff]
  %v356 = vld [vmem:[#allocation2 + $0x58] sm:$0xff]
  %v357 = vld [vmem:[#allocation2 + $0x60] sm:$0xff]
  %v358 = vld [vmem:[#allocation2 + $0x68] sm:$0xff]
  %v359 = vld [vmem:[#allocation2 + $0x70] sm:$0xff]
  %v360 = vld [vmem:[#allocation2 + $0x78] sm:$0xff]
  %v361 = vld [vmem:[#allocation2 + $0x80] sm:$0xff]
  %v362 = vld [vmem:[#allocation2 + $0x88] sm:$0xff]
  %v363 = vld [vmem:[#allocation2 + $0x90] sm:$0xff]
  %v364 = vld [vmem:[#allocation2 + $0x98] sm:$0xff]
  %v366 = vsel %vm164, %v344, 0
  %368 = vmatprep.subr.mxu0 %v346
  %369 = vmatpush1.msra.mxu0 %v345
  %370 = vmatprep.subr.mxu0 %v348
  %371 = vmatpush1.msra.mxu0 %v347
  %372 = vmatprep.subr.mxu0 %v350
  %373 = vmatpush1.msra.mxu0 %v349
  %374 = vmatprep.subr.mxu0 %v352
  %375 = vmatpush1.msra.mxu0 %v351
  %376 = vmatprep.subr.mxu0 %v354
  %377 = vmatpush1.msra.mxu0 %v353
  %378 = vmatprep.subr.mxu0 %v356
  %379 = vmatpush1.msra.mxu0 %v355
  %380 = vmatprep.subr.mxu0 %v358
  %381 = vmatpush1.msra.mxu0 %v357
  %382 = vmatprep.subr.mxu0 %v360
  %383 = vmatpush1.msra.mxu0 %v359
  %384 = vmatprep.subr.mxu0 %v362
  %385 = vmatpush1.msra.mxu0 %v361
  %386 = vmatprep.subr.mxu0 %v364
  %387 = vmatpush1.msra.mxu0 %v363
  %388 = vmatprep.subr.mxu0 0.0
  %389 = vmatpush1.msra.mxu0 0.0
  %390 = vmatprep.subr.mxu0 0.0
  %391 = vmatpush1.msra.mxu0 0.0
  %392 = vmatprep.subr.mxu0 0.0
  %393 = vmatpush1.msra.mxu0 0.0
  %394 = vmatprep.subr.mxu0 0.0
  %395 = vmatpush1.msra.mxu0 0.0
  %396 = vmatprep.subr.mxu0 0.0
  %397 = vmatpush1.msra.mxu0 0.0
  %398 = vmatprep.subr.mxu0 0.0
  %399 = vmatpush1.msra.mxu0 0.0
  %400 = vmatprep.subr.mxu0 0.0
  %401 = vmatpush1.msra.mxu0 0.0
  %402 = vmatprep.subr.mxu0 0.0
  %403 = vmatpush1.msra.mxu0 0.0
  %404 = vmatprep.subr.mxu0 0.0
  %405 = vmatpush1.msra.mxu0 0.0
  %406 = vmatprep.subr.mxu0 0.0
  %407 = vmatpush1.msra.mxu0 0.0
  %408 = vmatprep.subr.mxu0 0.0
  %409 = vmatpush1.msra.mxu0 0.0
  %410 = vmatprep.subr.mxu0 0.0
  %411 = vmatpush1.msra.mxu0 0.0
  %412 = vmatprep.subr.mxu0 0.0
  %413 = vmatpush1.msra.mxu0 0.0
  %414 = vmatprep.subr.mxu0 0.0
  %415 = vmatpush1.msra.mxu0 0.0
  %416 = vmatprep.subr.mxu0 0.0
  %417 = vmatpush1.msra.mxu0 0.0
  %418 = vmatprep.subr.mxu0 0.0
  %419 = vmatpush1.msra.mxu0 0.0
  %420 = vmatprep.subr.mxu0 0.0
  %421 = vmatpush1.msra.mxu0 0.0
  %422 = vmatprep.subr.mxu0 0.0
  %423 = vmatpush1.msra.mxu0 0.0
  %424 = vmatprep.subr.mxu0 0.0
  %425 = vmatpush1.msra.mxu0 0.0
  %426 = vmatprep.subr.mxu0 0.0
  %427 = vmatpush1.msra.mxu0 0.0
  %428 = vmatprep.subr.mxu0 0.0
  %429 = vmatpush1.msra.mxu0 0.0
  %430 = vmatprep.subr.mxu0 0.0
  %431 = vmatpush1.msra.mxu0 0.0
  %432 = vmatprep.mubr.f32.mxu0 0.0
  %433 = vmatmul.mubr.f32.gmra.mrb[0].mxu0 %v366
  %v434 = vpop.f32.mrb[0].mxu0
  %v435 = vadd.f32 0.0, %v434
  %v436 = vpop.f32.mrb[0].mxu0
  %v437 = vadd.f32 0.0, %v436
  %438 = vdwg.mxu0
  %v439 = vmul.f32 %v435, 0.01
  %v440 = vmul.f32 %v437, 0.01
  %v441 = vmax.f32 %v435, %v439
  %v442 = vmax.f32 %v437, %v440
  %v443 = vadd.f32 %v243, %v441
  %v444 = vadd.f32 %v244, %v442
  %v445 = vld [vmem:[%s3] sm:$0xff]
  %v446 = vld [vmem:[%s3 + $0x8] sm:$0xff]
  %v447 = vld [vmem:[%s3 + $0x10] sm:$0xff]
  %v448 = vld [vmem:[%s3 + $0x18] sm:$0xff]
  %v449 = vld [vmem:[%s3 + $0x20] sm:$0xff]
  %v450 = vld [vmem:[%s3 + $0x28] sm:$0xff]
  %v451 = vld [vmem:[%s3 + $0x30] sm:$0xff]
  %v452 = vld [vmem:[%s3 + $0x38] sm:$0xff]
  %v453 = vld [vmem:[%s3 + $0x40] sm:$0xff]
  %v454 = vld [vmem:[%s3 + $0x48] sm:$0xff]
  %v455 = vld [vmem:[%s3 + $0x50] sm:$0xff]
  %v456 = vld [vmem:[%s3 + $0x58] sm:$0xff]
  %v457 = vld [vmem:[%s3 + $0x60] sm:$0xff]
  %v458 = vld [vmem:[%s3 + $0x68] sm:$0xff]
  %v459 = vld [vmem:[%s3 + $0x70] sm:$0xff]
  %v460 = vld [vmem:[%s3 + $0x78] sm:$0xff]
  %v461 = vld [vmem:[%s3 + $0x80] sm:$0xff]
  %v462 = vld [vmem:[%s3 + $0x88] sm:$0xff]
  %v463 = vld [vmem:[%s3 + $0x90] sm:$0xff]
  %v464 = vld [vmem:[%s3 + $0x98] sm:$0xff]
  %v465 = vld [vmem:[%s3 + $0xa0] sm:$0xff]
  %v466 = vld [vmem:[%s3 + $0xa8] sm:$0xff]
  %v467 = vld [vmem:[%s3 + $0xb0] sm:$0xff]
  %v468 = vld [vmem:[%s3 + $0xb8] sm:$0xff]
  %v469 = vld [vmem:[%s3 + $0xc0] sm:$0xff]
  %v470 = vld [vmem:[%s3 + $0xc8] sm:$0xff]
  %v471 = vld [vmem:[%s3 + $0xd0] sm:$0xff]
  %v472 = vld [vmem:[%s3 + $0xd8] sm:$0xff]
  %v473 = vld [vmem:[%s3 + $0xe0] sm:$0xff]
  %v474 = vld [vmem:[%s3 + $0xe8] sm:$0xff]
  %v475 = vld [vmem:[%s3 + $0xf0] sm:$0xff]
  %v476 = vld [vmem:[%s3 + $0xf8] sm:$0xff]
  %477 = vmatprep.subr.mxu0 0.0
  %478 = vmatpush1.msra.mxu0 %v445
  %479 = vmatprep.subr.mxu0 0.0
  %480 = vmatpush1.msra.mxu0 %v446
  %481 = vmatprep.subr.mxu0 0.0
  %482 = vmatpush1.msra.mxu0 %v447
  %483 = vmatprep.subr.mxu0 0.0
  %484 = vmatpush1.msra.mxu0 %v448
  %485 = vmatprep.subr.mxu0 0.0
  %486 = vmatpush1.msra.mxu0 %v449
  %487 = vmatprep.subr.mxu0 0.0
  %488 = vmatpush1.msra.mxu0 %v450
  %489 = vmatprep.subr.mxu0 0.0
  %490 = vmatpush1.msra.mxu0 %v451
  %491 = vmatprep.subr.mxu0 0.0
  %492 = vmatpush1.msra.mxu0 %v452
  %493 = vmatprep.subr.mxu0 0.0
  %494 = vmatpush1.msra.mxu0 %v453
  %495 = vmatprep.subr.mxu0 0.0
  %496 = vmatpush1.msra.mxu0 %v454
  %497 = vmatprep.subr.mxu0 0.0
  %498 = vmatpush1.msra.mxu0 %v455
  %499 = vmatprep.subr.mxu0 0.0
  %500 = vmatpush1.msra.mxu0 %v456
  %501 = vmatprep.subr.mxu0 0.0
  %502 = vmatpush1.msra.mxu0 %v457
  %503 = vmatprep.subr.mxu0 0.0
  %504 = vmatpush1.msra.mxu0 %v458
  %505 = vmatprep.subr.mxu0 0.0
  %506 = vmatpush1.msra.mxu0 %v459
  %507 = vmatprep.subr.mxu0 0.0
  %508 = vmatpush1.msra.mxu0 %v460
  %509 = vmatprep.subr.mxu0 0.0
  %510 = vmatpush1.msra.mxu0 %v461
  %511 = vmatprep.subr.mxu0 0.0
  %512 = vmatpush1.msra.mxu0 %v462
  %513 = vmatprep.subr.mxu0 0.0
  %514 = vmatpush1.msra.mxu0 %v463
  %515 = vmatprep.subr.mxu0 0.0
  %516 = vmatpush1.msra.mxu0 %v464
  %517 = vmatprep.subr.mxu0 0.0
  %518 = vmatpush1.msra.mxu0 %v465
  %519 = vmatprep.subr.mxu0 0.0
  %520 = vmatpush1.msra.mxu0 %v466
  %521 = vmatprep.subr.mxu0 0.0
  %522 = vmatpush1.msra.mxu0 %v467
  %523 = vmatprep.subr.mxu0 0.0
  %524 = vmatpush1.msra.mxu0 %v468
  %525 = vmatprep.subr.mxu0 0.0
  %526 = vmatpush1.msra.mxu0 %v469
  %527 = vmatprep.subr.mxu0 0.0
  %528 = vmatpush1.msra.mxu0 %v470
  %529 = vmatprep.subr.mxu0 0.0
  %530 = vmatpush1.msra.mxu0 %v471
  %531 = vmatprep.subr.mxu0 0.0
  %532 = vmatpush1.msra.mxu0 %v472
  %533 = vmatprep.subr.mxu0 0.0
  %534 = vmatpush1.msra.mxu0 %v473
  %535 = vmatprep.subr.mxu0 0.0
  %536 = vmatpush1.msra.mxu0 %v474
  %537 = vmatprep.subr.mxu0 0.0
  %538 = vmatpush1.msra.mxu0 %v475
  %539 = vmatprep.subr.mxu0 0.0
  %540 = vmatpush1.msra.mxu0 %v476
  %541 = vmatprep.mubr.f32.mxu0 %v444
  %542 = vmatmul.mubr.f32.gmra.mrb[0].mxu0 %v443
  %v543 = vpop.f32.mrb[0].mxu0
  %v544 = vadd.f32 0.0, %v543
  %v545 = vpop.f32.mrb[0].mxu0
  %546 = vdwg.mxu0
  %v547 = vld [vmem:[%s4] sm:$0xff]
  %v548 = vld [vmem:[%s4 + $0x8] sm:$0xff]
  %vm549 = vcmask 64512
  %v551 = vsel %vm549, %v547, 0
  %v554 = vsel %vm549, %v548, 0
  %556 = vmatprep.subr.mxu0 0.0
  %557 = vmatpush1.msra.mxu0 %v544
  %558 = vmatprep.subr.mxu0 0.0
  %559 = vmatpush1.msra.mxu0 0.0
  %560 = vmatprep.subr.mxu0 0.0
  %561 = vmatpush1.msra.mxu0 0.0
  %562 = vmatprep.subr.mxu0 0.0
  %563 = vmatpush1.msra.mxu0 0.0
  %564 = vmatprep.subr.mxu0 0.0
  %565 = vmatpush1.msra.mxu0 0.0
  %566 = vmatprep.subr.mxu0 0.0
  %567 = vmatpush1.msra.mxu0 0.0
  %568 = vmatprep.subr.mxu0 0.0
  %569 = vmatpush1.msra.mxu0 0.0
  %570 = vmatprep.subr.mxu0 0.0
  %571 = vmatpush1.msra.mxu0 0.0
  %572 = vmatprep.subr.mxu0 0.0
  %573 = vmatpush1.msra.mxu0 0.0
  %574 = vmatprep.subr.mxu0 0.0
  %575 = vmatpush1.msra.mxu0 0.0
  %576 = vmatprep.subr.mxu0 0.0
  %577 = vmatpush1.msra.mxu0 0.0
  %578 = vmatprep.subr.mxu0 0.0
  %579 = vmatpush1.msra.mxu0 0.0
  %580 = vmatprep.subr.mxu0 0.0
  %581 = vmatpush1.msra.mxu0 0.0
  %582 = vmatprep.subr.mxu0 0.0
  %583 = vmatpush1.msra.mxu0 0.0
  %584 = vmatprep.subr.mxu0 0.0
  %585 = vmatpush1.msra.mxu0 0.0
  %586 = vmatprep.subr.mxu0 0.0
  %587 = vmatpush1.msra.mxu0 0.0
  %588 = vmatprep.subr.mxu0 0.0
  %589 = vmatpush1.msra.mxu0 0.0
  %590 = vmatprep.subr.mxu0 0.0
  %591 = vmatpush1.msra.mxu0 0.0
  %592 = vmatprep.subr.mxu0 0.0
  %593 = vmatpush1.msra.mxu0 0.0
  %594 = vmatprep.subr.mxu0 0.0
  %595 = vmatpush1.msra.mxu0 0.0
  %596 = vmatprep.subr.mxu0 0.0
  %597 = vmatpush1.msra.mxu0 0.0
  %598 = vmatprep.subr.mxu0 0.0
  %599 = vmatpush1.msra.mxu0 0.0
  %600 = vmatprep.subr.mxu0 0.0
  %601 = vmatpush1.msra.mxu0 0.0
  %602 = vmatprep.subr.mxu0 0.0
  %603 = vmatpush1.msra.mxu0 0.0
  %604 = vmatprep.subr.mxu0 0.0
  %605 = vmatpush1.msra.mxu0 0.0
  %606 = vmatprep.subr.mxu0 0.0
  %607 = vmatpush1.msra.mxu0 0.0
  %608 = vmatprep.subr.mxu0 0.0
  %609 = vmatpush1.msra.mxu0 0.0
  %610 = vmatprep.subr.mxu0 0.0
  %611 = vmatpush1.msra.mxu0 0.0
  %612 = vmatprep.subr.mxu0 0.0
  %613 = vmatpush1.msra.mxu0 0.0
  %614 = vmatprep.subr.mxu0 0.0
  %615 = vmatpush1.msra.mxu0 0.0
  %616 = vmatprep.subr.mxu0 0.0
  %617 = vmatpush1.msra.mxu0 0.0
  %618 = vmatprep.subr.mxu0 0.0
  %619 = vmatpush1.msra.mxu0 0.0
  %620 = vmatprep.mubr.f32.mxu0 0.0
  %621 = vmatmul.mubr.f32.gmra.mrb[0].mxu0 %v551
  %v622 = vpop.f32.mrb[0].mxu0
  %v623 = vadd.f32 0.0, %v622
  %v624 = vpop.f32.mrb[0].mxu0
  %625 = vmatprep.mubr.f32.mxu0 0.0
  %626 = vmatmul.mubr.f32.gmra.mrb[0].mxu0 %v554
  %v627 = vpop.f32.mrb[0].mxu0
  %v628 = vadd.f32 0.0, %v627
  %v629 = vpop.f32.mrb[0].mxu0
  %630 = vdwg.mxu0
  %631 = vst [vmem:[%s5] sm:$0xff] %v623
  %632 = vst [vmem:[%s5 + $0x8] sm:$0xff] %v628
  // Predicated region
  $region22: #{unit_forward.1} parent=0 // pred_check
    _
  $region23: #{unit_forward.1} parent=0 // pred_check_branch
    %634 = sbr.rel (0) target = $region25
  $region24: #{unit_forward.1} parent=0 // pred_region
    _
  $region25: #{unit_forward.1} parent=0 // pred_fallthru
    _
  // Predicated region
  $region26: #{unit_forward.1} parent=0 // pred_check
    _
  $region27: #{unit_forward.1} parent=0 // pred_check_branch
    %636 = sbr.rel (0) target = $region29
  $region28: #{unit_forward.1} parent=0 // pred_region
    _
  $region29: #{unit_forward.1} parent=0 // pred_fallthru
    _

</llo_original>
